<compile_context>
chip_gen: v5e
topology: v5e:2x2
jax: 0.10.0
libtpu: 0.0.40
codegen_flags: <defaults>
</compile_context>

<pallas_src>
import functools

import jax
import jax.numpy as jnp
from jax import lax
from jax.experimental import pallas as pl
from jax.experimental.pallas import tpu as pltpu


# Lanes processed per inner-loop iteration.  Multiple of 128 (vreg lane width).
# Caps the f32/bf16 layer intermediates at ~1.3 MB per chunk so they never
# scale with the (much larger) streamed batch tile.
_CHUNK = 2048
# Cap on lanes per grid step (review target: 16K-64K); keeps VMEM ~14 MB max.
_MAX_BLOCK_B = 65536


def _round_up(n, m):
    return ((n + m - 1) // m) * m


def _cdiv(a, b):
    return (a + b - 1) // b


def _plan(batch, block_b):
    """Pick (chunk, chunks_per_tile, n_grid_steps).

    chunk           : lanes per inner-loop iteration (multiple of 128)
    chunks_per_tile : inner-loop trip count; tile = chunks_per_tile*chunk lanes
    n_grid_steps    : batch grid size (>= 2 when the batch allows, so both
                      v7x TensorCores get work)
    All lane counts are multiples of 128 by construction (no masked stores).
    """
    block_b = max(128, min(int(block_b), _MAX_BLOCK_B))
    chunk = min(_CHUNK, _round_up(batch, 128))
    n_chunks = _cdiv(batch, chunk)
    chunks_per_tile_target = max(1, block_b // chunk)
    n_steps = max(1, _cdiv(n_chunks, chunks_per_tile_target))
    if n_chunks >= 2:
        n_steps = max(2, n_steps)        # v7x: keep both TensorCores busy
    chunks_per_tile = _cdiv(n_chunks, n_steps)
    return chunk, chunks_per_tile, n_steps


def _mlp_kernel(xt_ref, w1_ref, b1_ref, w2_ref, b2_ref, w3_ref, b3_ref, o_ref):
    """One batch tile: xt_ref (cpt, 18, chunk) bf16 -> o_ref (cpt, 1, chunk) f32.

    The fori_loop walks the lane-chunks of the tile so the layer intermediates
    stay ~1 MB regardless of how large the streamed tile is.
    """
    cpt, _, chunk = xt_ref.shape

    # VMEM-resident weights (constant block index across the batch grid).
    w1 = w1_ref[...]                                   # (64, 18) bf16
    w2 = w2_ref[...]                                   # (32, 64) bf16
    w3 = w3_ref[...]                                   # (1, 32)  bf16
    # Hoist the lane-broadcast of the biases out of the chunk loop
    # (JAX does not CSE broadcast_in_dim inside loop bodies).
    b1 = jnp.broadcast_to(b1_ref[...], (64, chunk))    # f32
    b2 = jnp.broadcast_to(b2_ref[...], (32, chunk))    # f32
    b3 = jnp.broadcast_to(b3_ref[...], (1, chunk))     # f32

    def body(c, carry):
        xc = xt_ref[c]                                 # (18, chunk) bf16
        # fc1 + ReLU: (64,18)@(18,chunk), f32 accumulate, bf16 for next MXU op.
        h1 = jnp.dot(w1, xc, preferred_element_type=jnp.float32)
        h1 = jnp.maximum(h1 + b1, 0.0).astype(jnp.bfloat16)
        # fc2 + ReLU: (32,64)@(64,chunk)
        h2 = jnp.dot(w2, h1, preferred_element_type=jnp.float32)
        h2 = jnp.maximum(h2 + b2, 0.0).astype(jnp.bfloat16)
        # fc3 + tanh: (1,32)@(32,chunk) -> lane-dense (1, chunk) store.
        h3 = jnp.dot(w3, h2, preferred_element_type=jnp.float32)
        o_ref[c] = jnp.tanh(h3 + b3)
        return carry

    lax.fori_loop(0, cpt, body, 0)


def prepare_params(torch_params):
    """One-time prep (NOT per forward): bf16 weights kept in PyTorch (out, in)
    layout — exactly what the batch-on-lanes kernel wants, so no transposes —
    and biases as (out, 1) f32 columns that broadcast over the lane/batch axis."""
    return dict(
        w1=torch_params["fc1_w"].astype(jnp.bfloat16),                 # (64, 18)
        b1=torch_params["fc1_b"].reshape(64, 1).astype(jnp.float32),   # (64, 1)
        w2=torch_params["fc2_w"].astype(jnp.bfloat16),                 # (32, 64)
        b2=torch_params["fc2_b"].reshape(32, 1).astype(jnp.float32),   # (32, 1)
        w3=torch_params["fc3_w"].astype(jnp.bfloat16),                 # (1, 32)
        b3=torch_params["fc3_b"].reshape(1, 1).astype(jnp.float32),    # (1, 1)
    )


@functools.partial(jax.jit, static_argnames=("block_b",))
def trading_model_forward(x, params, *, block_b=32768):
    """x: (B, 18) float32.  params: prepare_params output.  Returns (B, 1) f32."""
    batch = x.shape[0]
    chunk, cpt, n_steps = _plan(batch, block_b)
    n_chunks = n_steps * cpt
    b_pad = n_chunks * chunk

    # Single fused XLA prologue: zero-pad + reshape + transpose + bf16 cast.
    # Presents a lane-dense, chunk-major (n_chunks, 18, chunk) bf16 slab:
    # batch on lanes, contiguous per-tile DMA, halved input bytes vs f32.
    # TODO(synk): have the data producer emit x directly in this layout to
    # remove this remaining extra HBM write+read of the input stream.
    if b_pad != batch:
        x = jnp.pad(x, ((0, b_pad - batch), (0, 0)))
    xt = x.reshape(n_chunks, chunk, 18).transpose(0, 2, 1).astype(jnp.bfloat16)

    w1, b1 = params["w1"], params["b1"]
    w2, b2 = params["w2"], params["b2"]
    w3, b3 = params["w3"], params["b3"]

    def const_spec(a):
        # Whole-array block, same block index every grid step -> the ~6 KB of
        # weights stay VMEM-resident across the batch grid (no per-step DMA).
        return pl.BlockSpec(a.shape, lambda i: (0, 0))

    flops = 2 * b_pad * (18 * 64 + 64 * 32 + 32 * 1)
    bytes_accessed = (
        int(xt.size) * xt.dtype.itemsize              # streamed bf16 input
        + b_pad * 4                                   # f32 output
        + sum(int(p.size) * p.dtype.itemsize for p in (w1, b1, w2, b2, w3, b3))
    )

    out = pl.pallas_call(
        _mlp_kernel,
        out_shape=jax.ShapeDtypeStruct((n_chunks, 1, chunk), jnp.float32),
        grid=(n_steps,),
        in_specs=[
            # Streamed batch tile, auto double-buffered by the BlockSpec
            # pipeline.  (If the x DMA is still exposed on a given chip, this
            # is the spec to deepen with pipeline_mode=pl.Buffered(3).)
            pl.BlockSpec((cpt, 18, chunk), lambda i: (i, 0, 0)),
            const_spec(w1), const_spec(b1),
            const_spec(w2), const_spec(b2),
            const_spec(w3), const_spec(b3),
        ],
        out_specs=pl.BlockSpec((cpt, 1, chunk), lambda i: (i, 0, 0)),
        compiler_params=pltpu.CompilerParams(
            # Independent batch tiles -> v7x megacore sharding of the grid.
            dimension_semantics=("parallel",),
            # ~10-14 MB actually used with the default tiling; explicit cap
            # leaves headroom on v7x's 64 MiB VMEM, no-op on v5e/v6e (128 MiB).
            vmem_limit_bytes=32 * 1024 * 1024,
        ),
        cost_estimate=pl.CostEstimate(
            flops=flops, transcendentals=b_pad, bytes_accessed=bytes_accessed),
    )(xt, w1, b1, w2, b2, w3, b3)

    # Back to the PyTorch (B, 1) convention; padded tail rows dropped.
    return out.reshape(b_pad, 1)[:batch]


def init_params(key):
    """Deterministic synthetic init (PyTorch Linear default:
    U(-1/sqrt(fan_in), +1/sqrt(fan_in)))."""
    def linear(key, fan_in, fan_out):
        kw, kb = jax.random.split(key)
        bound = 1.0 / jnp.sqrt(fan_in)
        w = jax.random.uniform(kw, (fan_out, fan_in), jnp.float32, -bound, bound)
        b = jax.random.uniform(kb, (fan_out,), jnp.float32, -bound, bound)
        return w, b

    k1, k2, k3 = jax.random.split(key, 3)
    fc1_w, fc1_b = linear(k1, 18, 64)
    fc2_w, fc2_b = linear(k2, 64, 32)
    fc3_w, fc3_b = linear(k3, 32, 1)
    return dict(fc1_w=fc1_w, fc1_b=fc1_b,
                fc2_w=fc2_w, fc2_b=fc2_b,
                fc3_w=fc3_w, fc3_b=fc3_b)


def reference_forward(x, p):
    """Pure-JAX f32 reference matching the PyTorch module."""
    h = jnp.maximum(x @ p["fc1_w"].T + p["fc1_b"], 0.0)
    h = jnp.maximum(h @ p["fc2_w"].T + p["fc2_b"], 0.0)
    return jnp.tanh(h @ p["fc3_w"].T + p["fc3_b"])


if __name__ == "__main__":
    key = jax.random.PRNGKey(0)
    k_params, k_small, k_big = jax.random.split(key, 3)
    torch_params = init_params(k_params)
    params = prepare_params(torch_params)     # one-time weight prep (bf16)

    # Small demo batch: single 128-lane tile, 1 grid step.
    x = jax.random.normal(k_small, (8, 18), jnp.float32)
    out = jax.block_until_ready(trading_model_forward(x, params))
    ref = reference_forward(x, torch_params)
    assert out.shape == (8, 1)
    err = float(jnp.max(jnp.abs(out - ref)))
    assert err < 5e-2, f"small-batch mismatch vs f32 reference (max abs err {err})"

    # Modest larger batch exercising the multi-chunk inner loop and the
    # 2-step batch grid (the configuration the perf review targets).
    xb = jax.random.normal(k_big, (5000, 18), jnp.float32)
    outb = jax.block_until_ready(trading_model_forward(xb, params))
    refb = reference_forward(xb, torch_params)
    assert outb.shape == (5000, 1)
    errb = float(jnp.max(jnp.abs(outb - refb)))
    assert errb < 5e-2, f"large-batch mismatch vs f32 reference (max abs err {errb})"

    print("KERNEL_OK")
</pallas_src>

<mosaic_0001>
module attributes {stable_mosaic.version = 11 : i64} {
  func.func @_mlp_kernel(%arg0: i32, %arg1: memref<1x18x128xbf16, #tpu.memory_space<vmem>>, %arg2: memref<64x18xbf16, #tpu.memory_space<vmem>>, %arg3: memref<64x1xf32, #tpu.memory_space<vmem>>, %arg4: memref<32x64xbf16, #tpu.memory_space<vmem>>, %arg5: memref<32x1xf32, #tpu.memory_space<vmem>>, %arg6: memref<1x32xbf16, #tpu.memory_space<vmem>>, %arg7: memref<1x1xf32, #tpu.memory_space<vmem>>, %arg8: memref<1x1x128xf32, #tpu.memory_space<vmem>>) attributes {dimension_semantics = [#tpu.dimension_semantics<parallel>], iteration_bounds = array<i64: 1>, scalar_prefetch = 0 : i64, scratch_operands = 0 : i64, tpu.core_type = #tpu.core_type<tc>, window_params = [{transform_indices = @transform_0, window_bounds = array<i64: 1, 18, 128>}, {pipeline_mode = #tpu.pipeline_mode<synchronous>, transform_indices = @transform_1, window_bounds = array<i64: 64, 18>}, {pipeline_mode = #tpu.pipeline_mode<synchronous>, transform_indices = @transform_2, window_bounds = array<i64: 64, 1>}, {pipeline_mode = #tpu.pipeline_mode<synchronous>, transform_indices = @transform_3, window_bounds = array<i64: 32, 64>}, {pipeline_mode = #tpu.pipeline_mode<synchronous>, transform_indices = @transform_4, window_bounds = array<i64: 32, 1>}, {pipeline_mode = #tpu.pipeline_mode<synchronous>, transform_indices = @transform_5, window_bounds = array<i64: 1, 32>}, {pipeline_mode = #tpu.pipeline_mode<synchronous>, transform_indices = @transform_6, window_bounds = array<i64: 1, 1>}, {transform_indices = @transform_7, window_bounds = array<i64: 1, 1, 128>}]} {
    %c0 = arith.constant 0 : index
    %c0_0 = arith.constant 0 : index
    %0 = vector.load %arg2[%c0, %c0_0] : memref<64x18xbf16, #tpu.memory_space<vmem>>, vector<64x18xbf16>
    %c0_1 = arith.constant 0 : index
    %c0_2 = arith.constant 0 : index
    %1 = vector.load %arg4[%c0_1, %c0_2] : memref<32x64xbf16, #tpu.memory_space<vmem>>, vector<32x64xbf16>
    %c0_3 = arith.constant 0 : index
    %c0_4 = arith.constant 0 : index
    %2 = vector.load %arg6[%c0_3, %c0_4] : memref<1x32xbf16, #tpu.memory_space<vmem>>, vector<1x32xbf16>
    %c0_5 = arith.constant 0 : index
    %c0_6 = arith.constant 0 : index
    %3 = vector.load %arg3[%c0_5, %c0_6] : memref<64x1xf32, #tpu.memory_space<vmem>>, vector<64x1xf32>
    %4 = vector.shape_cast %3 : vector<64x1xf32> to vector<64x1xf32>
    %5 = vector.broadcast %4 : vector<64x1xf32> to vector<64x128xf32>
    %c0_7 = arith.constant 0 : index
    %c0_8 = arith.constant 0 : index
    %6 = vector.load %arg5[%c0_7, %c0_8] : memref<32x1xf32, #tpu.memory_space<vmem>>, vector<32x1xf32>
    %7 = vector.shape_cast %6 : vector<32x1xf32> to vector<32x1xf32>
    %8 = vector.broadcast %7 : vector<32x1xf32> to vector<32x128xf32>
    %c0_9 = arith.constant 0 : index
    %c0_10 = arith.constant 0 : index
    %9 = vector.load %arg7[%c0_9, %c0_10] : memref<1x1xf32, #tpu.memory_space<vmem>>, vector<1x1xf32>
    %10 = vector.shape_cast %9 : vector<1x1xf32> to vector<1x1xf32>
    %11 = vector.broadcast %10 : vector<1x1xf32> to vector<1x128xf32>
    %c0_i32 = arith.constant 0 : i32
    %12 = arith.index_cast %c0_i32 : i32 to index
    %c0_11 = arith.constant 0 : index
    %c0_12 = arith.constant 0 : index
    %13 = vector.load %arg1[%12, %c0_11, %c0_12] : memref<1x18x128xbf16, #tpu.memory_space<vmem>>, vector<1x18x128xbf16>
    %14 = vector.shape_cast %13 : vector<1x18x128xbf16> to vector<18x128xbf16>
    %cst = arith.constant dense<0.000000e+00> : vector<64x128xf32>
    %15 = tpu.matmul %0, %14, %cst {dimension_numbers = #tpu.dot_dimension_numbers<[1], [0], [0], [1], [0, 0, 1, 1], [], []>} : vector<64x18xbf16>, vector<18x128xbf16>, vector<64x128xf32> -> vector<64x128xf32>
    %16 = arith.addf %15, %5 : vector<64x128xf32>
    %cst_13 = arith.constant 0.000000e+00 : f32
    %17 = vector.broadcast %cst_13 : f32 to vector<64x128xf32>
    %18 = arith.maximumf %16, %17 : vector<64x128xf32>
    %19 = arith.truncf %18 : vector<64x128xf32> to vector<64x128xbf16>
    %cst_14 = arith.constant dense<0.000000e+00> : vector<32x128xf32>
    %20 = tpu.matmul %1, %19, %cst_14 {dimension_numbers = #tpu.dot_dimension_numbers<[1], [0], [0], [1], [0, 0, 1, 1], [], []>} : vector<32x64xbf16>, vector<64x128xbf16>, vector<32x128xf32> -> vector<32x128xf32>
    %21 = arith.addf %20, %8 : vector<32x128xf32>
    %cst_15 = arith.constant 0.000000e+00 : f32
    %22 = vector.broadcast %cst_15 : f32 to vector<32x128xf32>
    %23 = arith.maximumf %21, %22 : vector<32x128xf32>
    %24 = arith.truncf %23 : vector<32x128xf32> to vector<32x128xbf16>
    %cst_16 = arith.constant dense<0.000000e+00> : vector<1x128xf32>
    %25 = tpu.matmul %2, %24, %cst_16 {dimension_numbers = #tpu.dot_dimension_numbers<[1], [0], [0], [1], [0, 0, 1, 1], [], []>} : vector<1x32xbf16>, vector<32x128xbf16>, vector<1x128xf32> -> vector<1x128xf32>
    %26 = arith.addf %25, %11 : vector<1x128xf32>
    %27 = math.tanh %26 : vector<1x128xf32>
    %28 = arith.index_cast %c0_i32 : i32 to index
    %c0_17 = arith.constant 0 : index
    %c0_18 = arith.constant 0 : index
    %29 = vector.load %arg8[%28, %c0_17, %c0_18] : memref<1x1x128xf32, #tpu.memory_space<vmem>>, vector<1x1x128xf32>
    %30 = vector.shape_cast %29 : vector<1x1x128xf32> to vector<1x128xf32>
    %31 = vector.shape_cast %27 : vector<1x128xf32> to vector<1x1x128xf32>
    tpu.vector_store %arg8[%28, %c0_17, %c0_18], %31 {strides = array<i32>} : memref<1x1x128xf32, #tpu.memory_space<vmem>>, vector<1x1x128xf32>,
    %c1_i32 = arith.constant 1 : i32
    return
  }
  func.func @transform_0(%arg0: i32) -> (i32, i32, i32) {
    %c0_i32 = arith.constant 0 : i32
    %c0_i32_0 = arith.constant 0 : i32
    %c0_i32_1 = arith.constant 0 : i32
    return %arg0, %c0_i32, %c0_i32_0 : i32, i32, i32
  }
  func.func @transform_1(%arg0: i32) -> (i32, i32) {
    %c0_i32 = arith.constant 0 : i32
    %c0_i32_0 = arith.constant 0 : i32
    %c0_i32_1 = arith.constant 0 : i32
    return %c0_i32, %c0_i32_0 : i32, i32
  }
  func.func @transform_2(%arg0: i32) -> (i32, i32) {
    %c0_i32 = arith.constant 0 : i32
    %c0_i32_0 = arith.constant 0 : i32
    %c0_i32_1 = arith.constant 0 : i32
    return %c0_i32, %c0_i32_0 : i32, i32
  }
  func.func @transform_3(%arg0: i32) -> (i32, i32) {
    %c0_i32 = arith.constant 0 : i32
    %c0_i32_0 = arith.constant 0 : i32
    %c0_i32_1 = arith.constant 0 : i32
    return %c0_i32, %c0_i32_0 : i32, i32
  }
  func.func @transform_4(%arg0: i32) -> (i32, i32) {
    %c0_i32 = arith.constant 0 : i32
    %c0_i32_0 = arith.constant 0 : i32
    %c0_i32_1 = arith.constant 0 : i32
    return %c0_i32, %c0_i32_0 : i32, i32
  }
  func.func @transform_5(%arg0: i32) -> (i32, i32) {
    %c0_i32 = arith.constant 0 : i32
    %c0_i32_0 = arith.constant 0 : i32
    %c0_i32_1 = arith.constant 0 : i32
    return %c0_i32, %c0_i32_0 : i32, i32
  }
  func.func @transform_6(%arg0: i32) -> (i32, i32) {
    %c0_i32 = arith.constant 0 : i32
    %c0_i32_0 = arith.constant 0 : i32
    %c0_i32_1 = arith.constant 0 : i32
    return %c0_i32, %c0_i32_0 : i32, i32
  }
  func.func @transform_7(%arg0: i32) -> (i32, i32, i32) {
    %c0_i32 = arith.constant 0 : i32
    %c0_i32_0 = arith.constant 0 : i32
    %c0_i32_1 = arith.constant 0 : i32
    return %arg0, %c0_i32, %c0_i32_0 : i32, i32, i32
  }
}

</mosaic_0001>

<llo_original>
// kernel: trading_model_forward.1
$region0: #{trading_model_forward.1}
  #allocation0 [shape = 'u32[]', space=smem, size = 0x4, offset = 0x4, fixed_abs, tag = 'smem constant byte address 0x4 - core index']
  #allocation1 [shape = 'u32[72,128]{1,0:T(1,128)}', space=vmem, size = 0x9000, scoped, tag = 'internal scratch']
  #allocation2 [shape = 'f32[1,1]{1,0:T(1,128)S(1)}', space=vmem, size = 0x200, scoped, tag = 'scoped memory for trading_model_forward.1']
  %s0 = inlined_call_operand.vmem [shape: bf16[1,18,128], index: 0, kind: input, shape index: {}]
  %s1 = inlined_call_operand.vmem [shape: bf16[64,18], index: 1, kind: input, shape index: {}]
  %s2 = inlined_call_operand.vmem [shape: f32[64,1], index: 2, kind: input, shape index: {}]
  %s3 = inlined_call_operand.vmem [shape: bf16[32,64], index: 3, kind: input, shape index: {}]
  %s4 = inlined_call_operand.vmem [shape: f32[32,1], index: 4, kind: input, shape index: {}]
  %s5 = inlined_call_operand.vmem [shape: bf16[1,32], index: 5, kind: input, shape index: {}]
  %s6 = inlined_call_operand.<no memory space> [shape: f32[1,1], index: 6, kind: input, shape index: {}]
  %s7 = inlined_call_operand.vmem [shape: f32[1,1,128], index: 7, kind: output, shape index: {}]
  %s8 = sld [smem:[#allocation0]]
  $region38: #{trading_model_forward.1} parent=0
    _
  %s10 = ssub.s32 1, %s8
  %s11 = scalar_select 0, %s10, %s8
  %v12 = vstv %s6
  %13 = vst [vmem:[#allocation2] sm:$0x1] %v12
  // Predicated region
  $region2: #{trading_model_forward.1} parent=0 // pred_check
    _
  $region3: #{trading_model_forward.1} parent=0 // pred_check_branch
    %15 = sbr.rel (0) target = $region5
  $region4: #{trading_model_forward.1} parent=0 // pred_region
    _
  $region5: #{trading_model_forward.1} parent=0 // pred_fallthru
    _
  // Predicated region
  $region6: #{trading_model_forward.1} parent=0 // pred_check
    _
  $region7: #{trading_model_forward.1} parent=0 // pred_check_branch
    %17 = sbr.rel (0) target = $region9
  $region8: #{trading_model_forward.1} parent=0 // pred_region
    _
  $region9: #{trading_model_forward.1} parent=0 // pred_fallthru
    _
  // Predicated region
  $region10: #{trading_model_forward.1} parent=0 // pred_check
    _
  $region11: #{trading_model_forward.1} parent=0 // pred_check_branch
    %19 = sbr.rel (0) target = $region13
  $region12: #{trading_model_forward.1} parent=0 // pred_region
    _
  $region13: #{trading_model_forward.1} parent=0 // pred_fallthru
    _
  // Predicated region
  $region14: #{trading_model_forward.1} parent=0 // pred_check
    _
  $region15: #{trading_model_forward.1} parent=0 // pred_check_branch
    %21 = sbr.rel (0) target = $region17
  $region16: #{trading_model_forward.1} parent=0 // pred_region
    _
  $region17: #{trading_model_forward.1} parent=0 // pred_fallthru
    _
  // Predicated region
  $region18: #{trading_model_forward.1} parent=0 // pred_check
    _
  $region19: #{trading_model_forward.1} parent=0 // pred_check_branch
    %23 = sbr.rel (0) target = $region21
  $region20: #{trading_model_forward.1} parent=0 // pred_region
    _
  $region21: #{trading_model_forward.1} parent=0 // pred_fallthru
    _
  // Predicated region
  $region22: #{trading_model_forward.1} parent=0 // pred_check
    _
  $region23: #{trading_model_forward.1} parent=0 // pred_check_branch
    %25 = sbr.rel (0) target = $region25
  $region24: #{trading_model_forward.1} parent=0 // pred_region
    _
  $region25: #{trading_model_forward.1} parent=0 // pred_fallthru
    _
  // Predicated region
  $region26: #{trading_model_forward.1} parent=0 // pred_check
    _
  $region27: #{trading_model_forward.1} parent=0 // pred_check_branch
    %27 = sbr.rel (0) target = $region29
  $region28: #{trading_model_forward.1} parent=0 // pred_region
    _
  $region29: #{trading_model_forward.1} parent=0 // pred_fallthru
    _
  %v29 = vld [vmem:[%s1] sm:$0xf]
  %v30 = vld [vmem:[%s1 + $0x4] sm:$0xf]
  %v31 = vld [vmem:[%s1 + $0x8] sm:$0xf]
  %v32 = vld [vmem:[%s1 + $0xc] sm:$0xf]
  %v33 = vld [vmem:[%s1 + $0x10] sm:$0xf]
  %v34 = vld [vmem:[%s1 + $0x14] sm:$0xf]
  %v35 = vld [vmem:[%s1 + $0x18] sm:$0xf]
  %v36 = vld [vmem:[%s1 + $0x1c] sm:$0xf]
  %v37 = vld [vmem:[%s3] sm:$0xf]
  %v38 = vld [vmem:[%s3 + $0x4] sm:$0xf]
  %v39 = vld [vmem:[%s3 + $0x8] sm:$0xf]
  %v40 = vld [vmem:[%s3 + $0xc] sm:$0xf]
  %v41 = vld [vmem:[%s5] sm:$0x1]
  %v42 = vld [vmem:[%s2] sm:$0xff]
  %v43 = vld [vmem:[%s2 + $0x8] sm:$0xff]
  %v44 = vld [vmem:[%s2 + $0x10] sm:$0xff]
  %v45 = vld [vmem:[%s2 + $0x18] sm:$0xff]
  %v46 = vld [vmem:[%s2 + $0x20] sm:$0xff]
  %v47 = vld [vmem:[%s2 + $0x28] sm:$0xff]
  %v48 = vld [vmem:[%s2 + $0x30] sm:$0xff]
  %v49 = vld [vmem:[%s2 + $0x38] sm:$0xff]
  %51 = vset.pattern.permute.xlu0 0
  %52 = vperm.xlu0 %51, %v42
  %v53 = vpop.permute.xlu0 %52
  %56 = vset.pattern.permute.xlu0 0
  %57 = vperm.xlu0 %56, %v43
  %v58 = vpop.permute.xlu0 %57
  %61 = vset.pattern.permute.xlu0 0
  %62 = vperm.xlu0 %61, %v44
  %v63 = vpop.permute.xlu0 %62
  %66 = vset.pattern.permute.xlu0 0
  %67 = vperm.xlu0 %66, %v45
  %v68 = vpop.permute.xlu0 %67
  %71 = vset.pattern.permute.xlu0 0
  %72 = vperm.xlu0 %71, %v46
  %v73 = vpop.permute.xlu0 %72
  %76 = vset.pattern.permute.xlu0 0
  %77 = vperm.xlu0 %76, %v47
  %v78 = vpop.permute.xlu0 %77
  %81 = vset.pattern.permute.xlu0 0
  %82 = vperm.xlu0 %81, %v48
  %v83 = vpop.permute.xlu0 %82
  %86 = vset.pattern.permute.xlu0 0
  %87 = vperm.xlu0 %86, %v49
  %v88 = vpop.permute.xlu0 %87
  %v90 = vld [vmem:[%s4] sm:$0xff]
  %v91 = vld [vmem:[%s4 + $0x8] sm:$0xff]
  %v92 = vld [vmem:[%s4 + $0x10] sm:$0xff]
  %v93 = vld [vmem:[%s4 + $0x18] sm:$0xff]
  %95 = vset.pattern.permute.xlu0 0
  %96 = vperm.xlu0 %95, %v90
  %v97 = vpop.permute.xlu0 %96
  %100 = vset.pattern.permute.xlu0 0
  %101 = vperm.xlu0 %100, %v91
  %v102 = vpop.permute.xlu0 %101
  %105 = vset.pattern.permute.xlu0 0
  %106 = vperm.xlu0 %105, %v92
  %v107 = vpop.permute.xlu0 %106
  %110 = vset.pattern.permute.xlu0 0
  %111 = vperm.xlu0 %110, %v93
  %v112 = vpop.permute.xlu0 %111
  %v114 = vld [vmem:[#allocation2] sm:$0x1]
  %116 = vset.pattern.permute.xlu0 0
  %117 = vperm.xlu0 %116, %v114
  %v118 = vpop.permute.xlu0 %117
  %v120 = vperm.slane %v118, 0
  %v121 = vld [vmem:[%s0] sm:$0xf]
  %v122 = vld [vmem:[%s0 + $0x4] sm:$0xf]
  %v123 = vld [vmem:[%s0 + $0x8] sm:$0x1]
  %v132 = vunpack.c.l.b16 %v29
  %v133 = vunpack.c.l.b16 %v30
  %v134 = vunpack.c.l.b16 %v31
  %v135 = vunpack.c.l.b16 %v32
  %v136 = vunpack.c.l.b16 %v33
  %v137 = vunpack.c.l.b16 %v34
  %v138 = vunpack.c.l.b16 %v35
  %v139 = vunpack.c.l.b16 %v36
  %v140 = vpack.c.b16 %v133, %v132
  %v141 = vpack.c.b16 %v135, %v134
  %v142 = vpack.c.b16 %v137, %v136
  %v143 = vpack.c.b16 %v139, %v138
  %v147 = vunpack.c.l.b16 %v121
  %v148 = vunpack.c.l.b16 %v122
  %v149 = vunpack.c.l.b16 %v123
  %v150 = vpack.c.b16 %v148, %v147
  %v151 = vpack.c.b16 %v149, %v149
  %vm153 = vcmask 146432
  %v155 = vsel %vm153, %v140, 0
  %v158 = vsel %vm153, %v141, 0
  %v161 = vsel %vm153, %v142, 0
  %v164 = vsel %vm153, %v143, 0
  %vm166 = vcmask 1040384
  %v168 = vsel %vm166, %v151, 0
  %170 = vmatpush.bf16.msra.mxu0 0
  %171 = vmatpush.bf16.msra.mxu0 0
  %172 = vmatpush.bf16.msra.mxu0 0
  %173 = vmatpush.bf16.msra.mxu0 0
  %174 = vmatpush.bf16.msra.mxu0 0
  %175 = vmatpush.bf16.msra.mxu0 0
  %176 = vmatpush.bf16.msra.mxu0 %v168
  %177 = vmatpush.bf16.msra.mxu0 %v150
  %178 = vmatmul.bf16.gmra.mxu0 %v155
  %v179 = vpop.f32.mrf.mxu0
  %v180 = vadd.f32 %v53, %v179
  %v181 = vpop.f32.mrf.mxu0
  %v182 = vadd.f32 %v58, %v181
  %183 = vmatmul.bf16.gmra.mxu0 %v158
  %v184 = vpop.f32.mrf.mxu0
  %v185 = vadd.f32 %v63, %v184
  %v186 = vpop.f32.mrf.mxu0
  %v187 = vadd.f32 %v68, %v186
  %188 = vmatmul.bf16.gmra.mxu0 %v161
  %v189 = vpop.f32.mrf.mxu0
  %v190 = vadd.f32 %v73, %v189
  %v191 = vpop.f32.mrf.mxu0
  %v192 = vadd.f32 %v78, %v191
  %193 = vmatmul.bf16.gmra.mxu0 %v164
  %v194 = vpop.f32.mrf.mxu0
  %v195 = vadd.f32 %v83, %v194
  %v196 = vpop.f32.mrf.mxu0
  %v197 = vadd.f32 %v88, %v196
  %198 = vdwg.mxu0
  %v199 = vmax.f32 %v180, 0.0
  %v200 = vmax.f32 %v182, 0.0
  %v201 = vmax.f32 %v185, 0.0
  %v202 = vmax.f32 %v187, 0.0
  %v203 = vmax.f32 %v190, 0.0
  %v204 = vmax.f32 %v192, 0.0
  %v205 = vmax.f32 %v195, 0.0
  %v206 = vmax.f32 %v197, 0.0
  %v207 = vpack.c.bf16 %v200, %v199
  %v208 = vpack.c.bf16 %v202, %v201
  %v209 = vpack.c.bf16 %v204, %v203
  %v210 = vpack.c.bf16 %v206, %v205
  %v215 = vunpack.c.l.b16 %v37
  %v216 = vunpack.c.l.b16 %v38
  %v217 = vunpack.c.l.b16 %v39
  %v218 = vunpack.c.l.b16 %v40
  %v219 = vpack.c.b16 %v216, %v215
  %v220 = vpack.c.b16 %v218, %v217
  %vm221 = vcmask 523264
  %v223 = vsel %vm221, %v219, 0
  %v226 = vsel %vm221, %v220, 0
  %228 = vmatpush.bf16.msra.mxu0 0
  %229 = vmatpush.bf16.msra.mxu0 0
  %230 = vmatpush.bf16.msra.mxu0 0
  %231 = vmatpush.bf16.msra.mxu0 0
  %232 = vmatpush.bf16.msra.mxu0 %v210
  %233 = vmatpush.bf16.msra.mxu0 %v209
  %234 = vmatpush.bf16.msra.mxu0 %v208
  %235 = vmatpush.bf16.msra.mxu0 %v207
  %236 = vmatmul.bf16.gmra.mxu0 %v223
  %v237 = vpop.f32.mrf.mxu0
  %v238 = vadd.f32 %v97, %v237
  %v239 = vpop.f32.mrf.mxu0
  %v240 = vadd.f32 %v102, %v239
  %241 = vmatmul.bf16.gmra.mxu0 %v226
  %v242 = vpop.f32.mrf.mxu0
  %v243 = vadd.f32 %v107, %v242
  %v244 = vpop.f32.mrf.mxu0
  %v245 = vadd.f32 %v112, %v244
  %246 = vdwg.mxu0
  %v247 = vmax.f32 %v238, 0.0
  %v248 = vmax.f32 %v240, 0.0
  %v249 = vmax.f32 %v243, 0.0
  %v250 = vmax.f32 %v245, 0.0
  %v251 = vpack.c.bf16 %v248, %v247
  %v252 = vpack.c.bf16 %v250, %v249
  %vm253 = vcmask 261120
  %v255 = vsel %vm253, %v41, 0
  %257 = vmatpush.bf16.msra.mxu0 0
  %258 = vmatpush.bf16.msra.mxu0 0
  %259 = vmatpush.bf16.msra.mxu0 0
  %260 = vmatpush.bf16.msra.mxu0 0
  %261 = vmatpush.bf16.msra.mxu0 0
  %262 = vmatpush.bf16.msra.mxu0 0
  %263 = vmatpush.bf16.msra.mxu0 %v252
  %264 = vmatpush.bf16.msra.mxu0 %v251
  %265 = vmatmul.bf16.gmra.mxu0 %v255
  %v266 = vpop.f32.mrf.mxu0
  %v267 = vadd.f32 %v120, %v266
  %v268 = vpop.f32.mrf.mxu0
  %269 = vdwg.mxu0
  %v270 = vtanh.pop %v267
  %271 = vst [vmem:[%s7] sm:$0x1] %v270
  // Predicated region
  $region30: #{trading_model_forward.1} parent=0 // pred_check
    _
  $region31: #{trading_model_forward.1} parent=0 // pred_check_branch
    %273 = sbr.rel (0) target = $region33
  $region32: #{trading_model_forward.1} parent=0 // pred_region
    _
  $region33: #{trading_model_forward.1} parent=0 // pred_fallthru
    _
  // Predicated region
  $region34: #{trading_model_forward.1} parent=0 // pred_check
    _
  $region35: #{trading_model_forward.1} parent=0 // pred_check_branch
    %275 = sbr.rel (0) target = $region37
  $region36: #{trading_model_forward.1} parent=0 // pred_region
    _
  $region37: #{trading_model_forward.1} parent=0 // pred_fallthru
    _

</llo_original>
